<compile_context>
chip_gen: v6e
topology: v6e:2x2x1
jax: 0.10.0
libtpu: 0.0.40
codegen_flags: <defaults>
</compile_context>

<pallas_src>
import functools

import jax
import jax.numpy as jnp
from jax.experimental import pallas as pl
from jax.experimental.pallas import tpu as pltpu

BN_EPS = 1e-5
C = 6            # channels
P = 3            # H * W  (Flatten -> 18 features)
F = C * P        # 18
OUT_LANES = 128  # lane-dense output slab width

# Resident footprint per batch row: a handful of live (B,128)-padded f32 temps
# (~3 KiB/row) plus the (B,128) output and (B,18->128-padded) input.
_BYTES_PER_ROW = 4 * OUT_LANES * 8                 # conservative: 8 live padded rows
_PARAM_BYTES = 4 * ((4 * 21 * 18) + (19 * 19) + (20 * OUT_LANES))
# Gate the no-grid all-resident path on the smallest physical VMEM among
# targeted parts (v7x: 64 MiB), leaving headroom for the compiler.
_VMEM_CEILING_BYTES = 56 * (1 << 20)
_MAX_RESIDENT_ROWS = _VMEM_CEILING_BYTES // _BYTES_PER_ROW   # ~14K rows


# ---------------------------------------------------------------------------
# Fused kernel: conv/BN/ReLU x3 + policy head + value head, all in (B, 18) layout
# ---------------------------------------------------------------------------
def _fused_kernel(x_ref, sp_ref, h1_ref, h2_ref, out_ref, *, action_size):
    f32 = jnp.float32
    x = x_ref[...]                        # (B, 18), torch Flatten order (f = c*3 + p)
    bsz = x.shape[0]
    inv_n = 1.0 / (bsz * P)               # BN averages over B*H*W

    # group-sum matrix: G[i, j] = 1 iff lane i and lane j belong to the same channel
    G = sp_ref[3][0:F, :]                 # (18, 18)

    h = x
    for l in range(3):                    # Conv2d(6,6,1) + BatchNorm2d(6) (+ ReLU for l < 2)
        slab = sp_ref[l]                  # (21, 18): rows 0-17 kron-expanded W, 18 bias, 19 gamma, 20 beta
        w = slab[0:F, :]
        b = slab[F:F + 1, :]
        gamma = slab[F + 1:F + 2, :]
        beta = slab[F + 2:F + 3, :]

        h = jnp.dot(h, w, preferred_element_type=f32) + b          # per-pixel channel mix (1x1 conv)
        # Training-mode batch stats per channel (group of 3 lanes), biased variance.
        # Reordered (perf review): reduce over batch FIRST, then multiply the tiny
        # (1,18) row by G -- algebraically identical, ~3x fewer MXU pushes.
        s = jnp.sum(h, axis=0, keepdims=True)                       # (1, 18)
        mu = jnp.dot(s, G, preferred_element_type=f32) * inv_n      # (1, 18) per-channel mean broadcast
        d = h - mu
        ss = jnp.sum(d * d, axis=0, keepdims=True)                  # (1, 18)
        var = jnp.dot(ss, G, preferred_element_type=f32) * inv_n
        h = d * jax.lax.rsqrt(var + BN_EPS) * gamma + beta
        if l < 2:
            h = jnp.maximum(h, 0.0)

    # --- heads ---
    # head matmul 1: [policy Linear(18,18) | value Linear(18,1)] fused -> (B, 19), then ReLU.
    h1 = h1_ref[...]                      # (19, 19): rows 0-17 weights, row 18 bias
    hv = jnp.dot(h, h1[0:F, :], preferred_element_type=f32) + h1[F:F + 1, :]
    hv = jnp.maximum(hv, 0.0)             # cols 0..17 = policy hidden (ReLU), col 18 = value (ReLU)

    # head matmul 2: policy Linear(18, A) into lanes [0, A) + value pass-through into lane A,
    # zero elsewhere -> lane-dense (B, 128) output, single unmasked store.
    h2 = h2_ref[...]                      # (20, 128): rows 0-18 weights, row 19 bias
    u = jnp.dot(hv, h2[0:F + 1, :], preferred_element_type=f32) + h2[F + 1:F + 2, :]

    # Softplus (beta=1, threshold=20) on policy lanes; value lane passes through; padding stays 0.
    # log1p matches torch.nn.functional.softplus; the inf for u>20 sits in the untaken branch.
    sp_u = jnp.where(u > 20.0, u, jnp.log1p(jnp.exp(u)))
    lane = jax.lax.broadcasted_iota(jnp.int32, u.shape, 1)
    out_ref[...] = jnp.where(lane < action_size, sp_u, u)


_VMEM = pl.BlockSpec(memory_space=pltpu.MemorySpace.VMEM)


# ---------------------------------------------------------------------------
# Parameter construction (torch-like shapes) and packing into kernel buffers
# ---------------------------------------------------------------------------
def init_params(key, action_size):
    """Deterministic synthetic init matching the PyTorch module's parameter shapes."""
    ks = jax.random.split(key, 6)
    f32 = jnp.float32

    def unif(k, shape, fan_in):
        bound = 1.0 / jnp.sqrt(jnp.asarray(fan_in, f32))
        return jax.random.uniform(k, shape, f32, -bound, bound)

    p = {}
    for i, k in enumerate(ks[:3]):
        ka, kb = jax.random.split(k)
        p[f"conv_w{i}"] = unif(ka, (C, C), C)     # Conv2d(6,6,1) weight (out, in)
        p[f"conv_b{i}"] = unif(kb, (C,), C)
        p[f"bn_g{i}"] = jnp.ones((C,), f32)       # BatchNorm2d defaults
        p[f"bn_b{i}"] = jnp.zeros((C,), f32)
    ka, kb = jax.random.split(ks[3])
    p["p1_w"] = unif(ka, (F, F), F)               # Linear(18, 18)
    p["p1_b"] = unif(kb, (F,), F)
    ka, kb = jax.random.split(ks[4])
    p["p2_w"] = unif(ka, (action_size, F), F)     # Linear(18, action_size)
    p["p2_b"] = unif(kb, (action_size,), F)
    ka, kb = jax.random.split(ks[5])
    p["v_w"] = unif(ka, (1, F), F)                # Linear(18, 1)
    p["v_b"] = unif(kb, (1,), F)
    return p


def pack_params(p, action_size):
    """Pack all parameters into three contiguous kernel buffers (one DMA each)."""
    f32 = jnp.float32
    eye = jnp.eye(P, dtype=f32)

    slabs = []
    for i in range(3):
        w_exp = jnp.kron(p[f"conv_w{i}"].T, eye)             # (18,18): x @ w_exp == per-pixel 1x1 conv
        b_exp = jnp.repeat(p[f"conv_b{i}"], P)[None, :]      # (1,18)
        g_exp = jnp.repeat(p[f"bn_g{i}"], P)[None, :]
        be_exp = jnp.repeat(p[f"bn_b{i}"], P)[None, :]
        slabs.append(jnp.concatenate([w_exp, b_exp, g_exp, be_exp], axis=0))   # (21,18)
    idx = jnp.arange(F) // P
    G = (idx[:, None] == idx[None, :]).astype(f32)           # (18,18) channel group-sum matrix
    slabs.append(jnp.concatenate([G, jnp.zeros((3, F), f32)], axis=0))
    sp = jnp.stack(slabs)                                    # (4, 21, 18)

    # head 1: [policy Linear(18,18) | value Linear(18,1)], bias as last row.
    w1c = jnp.concatenate([p["p1_w"].T, p["v_w"].T], axis=1)                 # (18, 19)
    b1c = jnp.concatenate([p["p1_b"], p["v_b"]])[None, :]                    # (1, 19)
    h1 = jnp.concatenate([w1c, b1c], axis=0)                                 # (19, 19)

    # head 2: policy Linear(18, A) into lanes [0, A), value pass-through into lane A.
    A = action_size
    w2c = jnp.zeros((F + 1, OUT_LANES), f32)
    w2c = w2c.at[0:F, 0:A].set(p["p2_w"].T)
    w2c = w2c.at[F, A].set(1.0)
    b2c = jnp.zeros((1, OUT_LANES), f32).at[0, 0:A].set(p["p2_b"])
    h2 = jnp.concatenate([w2c, b2c], axis=0)                                 # (20, 128)

    return {"sp": sp, "h1": h1, "h2": h2}


# ---------------------------------------------------------------------------
# Forward wrapper
# ---------------------------------------------------------------------------
def actor_critic_forward(obs_nchw, packed, action_size):
    """obs_nchw: (B, 6, H, W) float32 with 6*H*W == 18. Returns (policy, value)."""
    B, c, h, w = obs_nchw.shape
    assert c == C and h * w == P, "module requires 6 channels and H*W == 3"
    assert action_size <= OUT_LANES - 1

    if B > _MAX_RESIDENT_ROWS:
        # TODO(synk): add a batch-tiled grid with accumulated BN statistics
        # (stats pass + normalize/heads pass) for rollout batches that exceed
        # the v7x 64 MiB VMEM ceiling; also pack outputs / emit narrow outputs
        # to cut the 512 B/row write amplification at that scale.
        raise NotImplementedError(
            f"batch {B} exceeds the no-grid VMEM-resident ceiling "
            f"({_MAX_RESIDENT_ROWS}); tiled path not implemented")

    x = obs_nchw.reshape(B, F)        # contiguous reshape == torch Flatten order; no transpose kernels

    # Size the scoped VMEM limit to the actual resident footprint (the 16/32 MiB
    # defaults are hit long before physical VMEM), with headroom, capped below
    # the smallest physical VMEM of the targeted parts (v7x: 64 MiB).
    est_bytes = B * _BYTES_PER_ROW + _PARAM_BYTES + (2 << 20)
    vmem_limit = int(min(_VMEM_CEILING_BYTES + (4 << 20), max(4 << 20, est_bytes)))

    out = pl.pallas_call(
        functools.partial(_fused_kernel, action_size=action_size),
        out_shape=jax.ShapeDtypeStruct((B, OUT_LANES), jnp.float32),
        in_specs=[_VMEM] * 4,
        out_specs=_VMEM,
        compiler_params=pltpu.CompilerParams(vmem_limit_bytes=vmem_limit),
    )(x, packed["sp"], packed["h1"], packed["h2"])

    # For small overhead-bound B this slab slice is negligible; at rollout-scale B
    # prefer narrow outputs / output packing (see TODO above).
    policy = out[:, :action_size]
    value = out[:, action_size:action_size + 1]
    return policy, value


# ---------------------------------------------------------------------------
# Pure-JAX reference of the PyTorch module (for a correctness spot-check)
# ---------------------------------------------------------------------------
def reference_forward(obs_nchw, p, action_size):
    B = obs_nchw.shape[0]
    h = obs_nchw.reshape(B, C, P)
    for i in range(3):
        h = jnp.einsum("oc,bcp->bop", p[f"conv_w{i}"], h) + p[f"conv_b{i}"][None, :, None]
        mu = jnp.mean(h, axis=(0, 2), keepdims=True)
        var = jnp.mean((h - mu) ** 2, axis=(0, 2), keepdims=True)
        h = (h - mu) / jnp.sqrt(var + BN_EPS) * p[f"bn_g{i}"][None, :, None] + p[f"bn_b{i}"][None, :, None]
        if i < 2:
            h = jnp.maximum(h, 0.0)
    z = h.reshape(B, F)
    ph = jnp.maximum(z @ p["p1_w"].T + p["p1_b"], 0.0)
    u = ph @ p["p2_w"].T + p["p2_b"]
    policy = jnp.where(u > 20.0, u, jnp.log1p(jnp.exp(jnp.minimum(u, 20.0))))
    value = jnp.maximum(z @ p["v_w"].T + p["v_b"], 0.0)
    return policy, value


if __name__ == "__main__":
    key = jax.random.PRNGKey(0)
    k_obs, k_par = jax.random.split(key)

    B, Hdim, Wdim = 2, 3, 1           # 6 * 3 * 1 = 18 flattened features
    action_size = 4

    obs = jax.random.normal(k_obs, (B, C, Hdim, Wdim), dtype=jnp.float32)
    params = init_params(k_par, action_size)
    packed = pack_params(params, action_size)

    fwd = jax.jit(lambda o: actor_critic_forward(o, packed, action_size))
    policy, value = fwd(obs)
    jax.block_until_ready((policy, value))

    assert policy.shape == (B, action_size) and value.shape == (B, 1)
    assert bool(jnp.all(jnp.isfinite(policy))) and bool(jnp.all(jnp.isfinite(value)))

    ref_policy, ref_value = reference_forward(obs, params, action_size)
    err_p = float(jnp.max(jnp.abs(policy - ref_policy)))
    err_v = float(jnp.max(jnp.abs(value - ref_value)))
    assert err_p < 1e-2 and err_v < 1e-2, (err_p, err_v)

    print("KERNEL_OK")
</pallas_src>

<mosaic_0001>
module attributes {stable_mosaic.version = 11 : i64} {
  func.func @_fused_kernel(%arg0: memref<2x18xf32, #tpu.memory_space<vmem>>, %arg1: memref<4x21x18xf32, #tpu.memory_space<vmem>>, %arg2: memref<19x19xf32, #tpu.memory_space<vmem>>, %arg3: memref<20x128xf32, #tpu.memory_space<vmem>>, %arg4: memref<2x128xf32, #tpu.memory_space<vmem>>) attributes {dimension_semantics = [], scalar_prefetch = 0 : i64, scratch_operands = 0 : i64, tpu.core_type = #tpu.core_type<tc>} {
    %c0 = arith.constant 0 : index
    %c0_0 = arith.constant 0 : index
    %0 = vector.load %arg0[%c0, %c0_0] : memref<2x18xf32, #tpu.memory_space<vmem>>, vector<2x18xf32>
    %c3 = arith.constant 3 : index
    %c0_1 = arith.constant 0 : index
    %c0_2 = arith.constant 0 : index
    %1 = vector.load %arg1[%c3, %c0_1, %c0_2] : memref<4x21x18xf32, #tpu.memory_space<vmem>>, vector<1x21x18xf32>
    %2 = vector.shape_cast %1 : vector<1x21x18xf32> to vector<21x18xf32>
    %3 = vector.extract_strided_slice %2 {offsets = [0, 0], sizes = [18, 18], strides = [1, 1]} : vector<21x18xf32> to vector<18x18xf32>
    %c0_3 = arith.constant 0 : index
    %c0_4 = arith.constant 0 : index
    %c0_5 = arith.constant 0 : index
    %4 = vector.load %arg1[%c0_3, %c0_4, %c0_5] : memref<4x21x18xf32, #tpu.memory_space<vmem>>, vector<1x21x18xf32>
    %5 = vector.shape_cast %4 : vector<1x21x18xf32> to vector<21x18xf32>
    %6 = vector.extract_strided_slice %5 {offsets = [0, 0], sizes = [18, 18], strides = [1, 1]} : vector<21x18xf32> to vector<18x18xf32>
    %7 = vector.extract_strided_slice %5 {offsets = [18, 0], sizes = [1, 18], strides = [1, 1]} : vector<21x18xf32> to vector<1x18xf32>
    %8 = vector.extract_strided_slice %5 {offsets = [19, 0], sizes = [1, 18], strides = [1, 1]} : vector<21x18xf32> to vector<1x18xf32>
    %9 = vector.extract_strided_slice %5 {offsets = [20, 0], sizes = [1, 18], strides = [1, 1]} : vector<21x18xf32> to vector<1x18xf32>
    %cst = arith.constant dense<0.000000e+00> : vector<2x18xf32>
    %10 = tpu.matmul %0, %6, %cst {dimension_numbers = #tpu.dot_dimension_numbers<[1], [0], [0], [1], [0, 0, 1, 1], [], []>} : vector<2x18xf32>, vector<18x18xf32>, vector<2x18xf32> -> vector<2x18xf32>
    %11 = vector.broadcast %7 : vector<1x18xf32> to vector<2x18xf32>
    %12 = arith.addf %10, %11 : vector<2x18xf32>
    %cst_6 = arith.constant dense<0.000000e+00> : vector<18xf32>
    %13 = vector.multi_reduction <add>, %12, %cst_6 [0] : vector<2x18xf32> to vector<18xf32>
    %14 = vector.shape_cast %13 : vector<18xf32> to vector<1x18xf32>
    %cst_7 = arith.constant dense<0.000000e+00> : vector<1x18xf32>
    %15 = tpu.matmul %14, %3, %cst_7 {dimension_numbers = #tpu.dot_dimension_numbers<[1], [0], [0], [1], [0, 0, 1, 1], [], []>} : vector<1x18xf32>, vector<18x18xf32>, vector<1x18xf32> -> vector<1x18xf32>
    %cst_8 = arith.constant 0.166666672 : f32
    %16 = vector.broadcast %cst_8 : f32 to vector<1x18xf32>
    %17 = arith.mulf %15, %16 : vector<1x18xf32>
    %18 = vector.broadcast %17 : vector<1x18xf32> to vector<2x18xf32>
    %19 = arith.subf %12, %18 : vector<2x18xf32>
    %20 = arith.mulf %19, %19 : vector<2x18xf32>
    %cst_9 = arith.constant dense<0.000000e+00> : vector<18xf32>
    %21 = vector.multi_reduction <add>, %20, %cst_9 [0] : vector<2x18xf32> to vector<18xf32>
    %22 = vector.shape_cast %21 : vector<18xf32> to vector<1x18xf32>
    %cst_10 = arith.constant dense<0.000000e+00> : vector<1x18xf32>
    %23 = tpu.matmul %22, %3, %cst_10 {dimension_numbers = #tpu.dot_dimension_numbers<[1], [0], [0], [1], [0, 0, 1, 1], [], []>} : vector<1x18xf32>, vector<18x18xf32>, vector<1x18xf32> -> vector<1x18xf32>
    %cst_11 = arith.constant 0.166666672 : f32
    %24 = vector.broadcast %cst_11 : f32 to vector<1x18xf32>
    %25 = arith.mulf %23, %24 : vector<1x18xf32>
    %cst_12 = arith.constant 9.99999974E-6 : f32
    %26 = vector.broadcast %cst_12 : f32 to vector<1x18xf32>
    %27 = arith.addf %25, %26 : vector<1x18xf32>
    %28 = math.rsqrt %27 : vector<1x18xf32>
    %29 = vector.broadcast %28 : vector<1x18xf32> to vector<2x18xf32>
    %30 = arith.mulf %19, %29 : vector<2x18xf32>
    %31 = vector.broadcast %8 : vector<1x18xf32> to vector<2x18xf32>
    %32 = arith.mulf %30, %31 : vector<2x18xf32>
    %33 = vector.broadcast %9 : vector<1x18xf32> to vector<2x18xf32>
    %34 = arith.addf %32, %33 : vector<2x18xf32>
    %cst_13 = arith.constant 0.000000e+00 : f32
    %35 = vector.broadcast %cst_13 : f32 to vector<2x18xf32>
    %36 = arith.maximumf %34, %35 : vector<2x18xf32>
    %c1 = arith.constant 1 : index
    %c0_14 = arith.constant 0 : index
    %c0_15 = arith.constant 0 : index
    %37 = vector.load %arg1[%c1, %c0_14, %c0_15] : memref<4x21x18xf32, #tpu.memory_space<vmem>>, vector<1x21x18xf32>
    %38 = vector.shape_cast %37 : vector<1x21x18xf32> to vector<21x18xf32>
    %39 = vector.extract_strided_slice %38 {offsets = [0, 0], sizes = [18, 18], strides = [1, 1]} : vector<21x18xf32> to vector<18x18xf32>
    %40 = vector.extract_strided_slice %38 {offsets = [18, 0], sizes = [1, 18], strides = [1, 1]} : vector<21x18xf32> to vector<1x18xf32>
    %41 = vector.extract_strided_slice %38 {offsets = [19, 0], sizes = [1, 18], strides = [1, 1]} : vector<21x18xf32> to vector<1x18xf32>
    %42 = vector.extract_strided_slice %38 {offsets = [20, 0], sizes = [1, 18], strides = [1, 1]} : vector<21x18xf32> to vector<1x18xf32>
    %cst_16 = arith.constant dense<0.000000e+00> : vector<2x18xf32>
    %43 = tpu.matmul %36, %39, %cst_16 {dimension_numbers = #tpu.dot_dimension_numbers<[1], [0], [0], [1], [0, 0, 1, 1], [], []>} : vector<2x18xf32>, vector<18x18xf32>, vector<2x18xf32> -> vector<2x18xf32>
    %44 = vector.broadcast %40 : vector<1x18xf32> to vector<2x18xf32>
    %45 = arith.addf %43, %44 : vector<2x18xf32>
    %cst_17 = arith.constant dense<0.000000e+00> : vector<18xf32>
    %46 = vector.multi_reduction <add>, %45, %cst_17 [0] : vector<2x18xf32> to vector<18xf32>
    %47 = vector.shape_cast %46 : vector<18xf32> to vector<1x18xf32>
    %cst_18 = arith.constant dense<0.000000e+00> : vector<1x18xf32>
    %48 = tpu.matmul %47, %3, %cst_18 {dimension_numbers = #tpu.dot_dimension_numbers<[1], [0], [0], [1], [0, 0, 1, 1], [], []>} : vector<1x18xf32>, vector<18x18xf32>, vector<1x18xf32> -> vector<1x18xf32>
    %cst_19 = arith.constant 0.166666672 : f32
    %49 = vector.broadcast %cst_19 : f32 to vector<1x18xf32>
    %50 = arith.mulf %48, %49 : vector<1x18xf32>
    %51 = vector.broadcast %50 : vector<1x18xf32> to vector<2x18xf32>
    %52 = arith.subf %45, %51 : vector<2x18xf32>
    %53 = arith.mulf %52, %52 : vector<2x18xf32>
    %cst_20 = arith.constant dense<0.000000e+00> : vector<18xf32>
    %54 = vector.multi_reduction <add>, %53, %cst_20 [0] : vector<2x18xf32> to vector<18xf32>
    %55 = vector.shape_cast %54 : vector<18xf32> to vector<1x18xf32>
    %cst_21 = arith.constant dense<0.000000e+00> : vector<1x18xf32>
    %56 = tpu.matmul %55, %3, %cst_21 {dimension_numbers = #tpu.dot_dimension_numbers<[1], [0], [0], [1], [0, 0, 1, 1], [], []>} : vector<1x18xf32>, vector<18x18xf32>, vector<1x18xf32> -> vector<1x18xf32>
    %cst_22 = arith.constant 0.166666672 : f32
    %57 = vector.broadcast %cst_22 : f32 to vector<1x18xf32>
    %58 = arith.mulf %56, %57 : vector<1x18xf32>
    %cst_23 = arith.constant 9.99999974E-6 : f32
    %59 = vector.broadcast %cst_23 : f32 to vector<1x18xf32>
    %60 = arith.addf %58, %59 : vector<1x18xf32>
    %61 = math.rsqrt %60 : vector<1x18xf32>
    %62 = vector.broadcast %61 : vector<1x18xf32> to vector<2x18xf32>
    %63 = arith.mulf %52, %62 : vector<2x18xf32>
    %64 = vector.broadcast %41 : vector<1x18xf32> to vector<2x18xf32>
    %65 = arith.mulf %63, %64 : vector<2x18xf32>
    %66 = vector.broadcast %42 : vector<1x18xf32> to vector<2x18xf32>
    %67 = arith.addf %65, %66 : vector<2x18xf32>
    %cst_24 = arith.constant 0.000000e+00 : f32
    %68 = vector.broadcast %cst_24 : f32 to vector<2x18xf32>
    %69 = arith.maximumf %67, %68 : vector<2x18xf32>
    %c2 = arith.constant 2 : index
    %c0_25 = arith.constant 0 : index
    %c0_26 = arith.constant 0 : index
    %70 = vector.load %arg1[%c2, %c0_25, %c0_26] : memref<4x21x18xf32, #tpu.memory_space<vmem>>, vector<1x21x18xf32>
    %71 = vector.shape_cast %70 : vector<1x21x18xf32> to vector<21x18xf32>
    %72 = vector.extract_strided_slice %71 {offsets = [0, 0], sizes = [18, 18], strides = [1, 1]} : vector<21x18xf32> to vector<18x18xf32>
    %73 = vector.extract_strided_slice %71 {offsets = [18, 0], sizes = [1, 18], strides = [1, 1]} : vector<21x18xf32> to vector<1x18xf32>
    %74 = vector.extract_strided_slice %71 {offsets = [19, 0], sizes = [1, 18], strides = [1, 1]} : vector<21x18xf32> to vector<1x18xf32>
    %75 = vector.extract_strided_slice %71 {offsets = [20, 0], sizes = [1, 18], strides = [1, 1]} : vector<21x18xf32> to vector<1x18xf32>
    %cst_27 = arith.constant dense<0.000000e+00> : vector<2x18xf32>
    %76 = tpu.matmul %69, %72, %cst_27 {dimension_numbers = #tpu.dot_dimension_numbers<[1], [0], [0], [1], [0, 0, 1, 1], [], []>} : vector<2x18xf32>, vector<18x18xf32>, vector<2x18xf32> -> vector<2x18xf32>
    %77 = vector.broadcast %73 : vector<1x18xf32> to vector<2x18xf32>
    %78 = arith.addf %76, %77 : vector<2x18xf32>
    %cst_28 = arith.constant dense<0.000000e+00> : vector<18xf32>
    %79 = vector.multi_reduction <add>, %78, %cst_28 [0] : vector<2x18xf32> to vector<18xf32>
    %80 = vector.shape_cast %79 : vector<18xf32> to vector<1x18xf32>
    %cst_29 = arith.constant dense<0.000000e+00> : vector<1x18xf32>
    %81 = tpu.matmul %80, %3, %cst_29 {dimension_numbers = #tpu.dot_dimension_numbers<[1], [0], [0], [1], [0, 0, 1, 1], [], []>} : vector<1x18xf32>, vector<18x18xf32>, vector<1x18xf32> -> vector<1x18xf32>
    %cst_30 = arith.constant 0.166666672 : f32
    %82 = vector.broadcast %cst_30 : f32 to vector<1x18xf32>
    %83 = arith.mulf %81, %82 : vector<1x18xf32>
    %84 = vector.broadcast %83 : vector<1x18xf32> to vector<2x18xf32>
    %85 = arith.subf %78, %84 : vector<2x18xf32>
    %86 = arith.mulf %85, %85 : vector<2x18xf32>
    %cst_31 = arith.constant dense<0.000000e+00> : vector<18xf32>
    %87 = vector.multi_reduction <add>, %86, %cst_31 [0] : vector<2x18xf32> to vector<18xf32>
    %88 = vector.shape_cast %87 : vector<18xf32> to vector<1x18xf32>
    %cst_32 = arith.constant dense<0.000000e+00> : vector<1x18xf32>
    %89 = tpu.matmul %88, %3, %cst_32 {dimension_numbers = #tpu.dot_dimension_numbers<[1], [0], [0], [1], [0, 0, 1, 1], [], []>} : vector<1x18xf32>, vector<18x18xf32>, vector<1x18xf32> -> vector<1x18xf32>
    %cst_33 = arith.constant 0.166666672 : f32
    %90 = vector.broadcast %cst_33 : f32 to vector<1x18xf32>
    %91 = arith.mulf %89, %90 : vector<1x18xf32>
    %cst_34 = arith.constant 9.99999974E-6 : f32
    %92 = vector.broadcast %cst_34 : f32 to vector<1x18xf32>
    %93 = arith.addf %91, %92 : vector<1x18xf32>
    %94 = math.rsqrt %93 : vector<1x18xf32>
    %95 = vector.broadcast %94 : vector<1x18xf32> to vector<2x18xf32>
    %96 = arith.mulf %85, %95 : vector<2x18xf32>
    %97 = vector.broadcast %74 : vector<1x18xf32> to vector<2x18xf32>
    %98 = arith.mulf %96, %97 : vector<2x18xf32>
    %99 = vector.broadcast %75 : vector<1x18xf32> to vector<2x18xf32>
    %100 = arith.addf %98, %99 : vector<2x18xf32>
    %c0_35 = arith.constant 0 : index
    %c0_36 = arith.constant 0 : index
    %101 = vector.load %arg2[%c0_35, %c0_36] : memref<19x19xf32, #tpu.memory_space<vmem>>, vector<19x19xf32>
    %102 = vector.extract_strided_slice %101 {offsets = [0, 0], sizes = [18, 19], strides = [1, 1]} : vector<19x19xf32> to vector<18x19xf32>
    %cst_37 = arith.constant dense<0.000000e+00> : vector<2x19xf32>
    %103 = tpu.matmul %100, %102, %cst_37 {dimension_numbers = #tpu.dot_dimension_numbers<[1], [0], [0], [1], [0, 0, 1, 1], [], []>} : vector<2x18xf32>, vector<18x19xf32>, vector<2x19xf32> -> vector<2x19xf32>
    %104 = vector.extract_strided_slice %101 {offsets = [18, 0], sizes = [1, 19], strides = [1, 1]} : vector<19x19xf32> to vector<1x19xf32>
    %105 = vector.broadcast %104 : vector<1x19xf32> to vector<2x19xf32>
    %106 = arith.addf %103, %105 : vector<2x19xf32>
    %cst_38 = arith.constant 0.000000e+00 : f32
    %107 = vector.broadcast %cst_38 : f32 to vector<2x19xf32>
    %108 = arith.maximumf %106, %107 : vector<2x19xf32>
    %c0_39 = arith.constant 0 : index
    %c0_40 = arith.constant 0 : index
    %109 = vector.load %arg3[%c0_39, %c0_40] : memref<20x128xf32, #tpu.memory_space<vmem>>, vector<20x128xf32>
    %110 = vector.extract_strided_slice %109 {offsets = [0, 0], sizes = [19, 128], strides = [1, 1]} : vector<20x128xf32> to vector<19x128xf32>
    %cst_41 = arith.constant dense<0.000000e+00> : vector<2x128xf32>
    %111 = tpu.matmul %108, %110, %cst_41 {dimension_numbers = #tpu.dot_dimension_numbers<[1], [0], [0], [1], [0, 0, 1, 1], [], []>} : vector<2x19xf32>, vector<19x128xf32>, vector<2x128xf32> -> vector<2x128xf32>
    %112 = vector.extract_strided_slice %109 {offsets = [19, 0], sizes = [1, 128], strides = [1, 1]} : vector<20x128xf32> to vector<1x128xf32>
    %113 = vector.broadcast %112 : vector<1x128xf32> to vector<2x128xf32>
    %114 = arith.addf %111, %113 : vector<2x128xf32>
    %cst_42 = arith.constant 2.000000e+01 : f32
    %115 = vector.broadcast %cst_42 : f32 to vector<2x128xf32>
    %116 = arith.cmpf ogt, %114, %115 : vector<2x128xf32>
    %117 = math.exp %114 : vector<2x128xf32>
    %118 = math.log1p %117 : vector<2x128xf32>
    %119 = arith.select %116, %114, %118 : vector<2x128xi1>, vector<2x128xf32>
    %120 = tpu.iota {dimensions = array<i32: 1>} : vector<2x128xi32>
    %c4_i32 = arith.constant 4 : i32
    %121 = vector.broadcast %c4_i32 : i32 to vector<2x128xi32>
    %122 = arith.cmpi slt, %120, %121 : vector<2x128xi32>
    %123 = arith.select %122, %119, %114 : vector<2x128xi1>, vector<2x128xf32>
    %c0_43 = arith.constant 0 : index
    %c0_44 = arith.constant 0 : index
    %124 = vector.load %arg4[%c0_43, %c0_44] : memref<2x128xf32, #tpu.memory_space<vmem>>, vector<2x128xf32>
    tpu.vector_store %arg4[%c0_43, %c0_44], %123 {strides = array<i32>} : memref<2x128xf32, #tpu.memory_space<vmem>>, vector<2x128xf32>,
    return
  }
}

</mosaic_0001>

<llo_original>
// kernel: _lambda_.1
$region0: #{_lambda_.1}
  #allocation0 [shape = 'u32[]', space=smem, size = 0x4, offset = 0x4, fixed_abs, tag = 'smem constant byte address 0x4 - core index']
  #allocation1 [shape = 'u32[144,128]{1,0:T(1,128)}', space=vmem, size = 0x12000, scoped, tag = 'internal scratch']
  %s0 = inlined_call_operand.vmem [shape: f32[2,18], index: 0, kind: input, shape index: {}]
  %s1 = inlined_call_operand.hbm [shape: f32[4,21,18], index: 1, kind: input, shape index: {}]
  %s2 = inlined_call_operand.hbm [shape: f32[19,19], index: 2, kind: input, shape index: {}]
  %s3 = inlined_call_operand.vmem [shape: f32[20,128], index: 3, kind: input, shape index: {}]
  %s4 = inlined_call_operand.vmem [shape: f32[2,128], index: 4, kind: output, shape index: {}]
  %s5 = sld [smem:[#allocation0]]
  $region34: #{_lambda_.1} parent=0
    _
  %s7 = ssub.s32 1, %s5
  %s8 = scalar_select 0, %s7, %s5
  $region1: #{_lambda_.1} parent=0
    #allocation2 [shape = 'u8[49152]{0}', space=vmem, size = 0xc000, scoped, tag = 'input window, operand 1, single buffered']
    #allocation3 [shape = 's32[1]{0}', space=sflag, size = 0x4, scoped, tag = 'scoped memory for _lambda_.1']
    #allocation4 [shape = 'u8[12288]{0}', space=vmem, size = 0x3000, scoped, tag = 'input window, operand 2, single buffered']
    #allocation5 [shape = 's32[1]{0}', space=sflag, size = 0x4, scoped, tag = 'scoped memory for _lambda_.1']
    %9 = vsyncpa [#allocation3], 0
    %10 = vsyncpa [#allocation5], 0
    // Predicated region
    $region2: #{_lambda_.1} parent=1 // pred_check
      _
    $region3: #{_lambda_.1} parent=1 // pred_check_branch
      %12 = sbr.rel (0) target = $region5
    $region4: #{_lambda_.1} parent=1 // pred_region
      _
    $region5: #{_lambda_.1} parent=1 // pred_fallthru
      _
    // Predicated region
    $region6: #{_lambda_.1} parent=1 // pred_check
      _
    $region7: #{_lambda_.1} parent=1 // pred_check_branch
      %14 = sbr.rel (0) target = $region9
    $region8: #{_lambda_.1} parent=1 // pred_region
      %s16 = ssub.s32 1536, 1536
      %17 = vsyncadd [#allocation3], %s16
      %s18 = sshll.u32 [#allocation2], 4
      %s19 = int_to_ptr.vmem [resolvable:$true] %s18
      %24 = dma.hbm_to_vmem [thread:$0]  %s1, 1536, %s19, [#allocation3], 128, 128, 8
    $region9: #{_lambda_.1} parent=1 // pred_fallthru
      _
    // Predicated region
    $region10: #{_lambda_.1} parent=1 // pred_check
      _
    $region11: #{_lambda_.1} parent=1 // pred_check_branch
      %26 = sbr.rel (0) target = $region13
    $region12: #{_lambda_.1} parent=1 // pred_region
      %s28 = ssub.s32 384, 384
      %29 = vsyncadd [#allocation5], %s28
      %s30 = sshll.u32 [#allocation4], 4
      %s31 = int_to_ptr.vmem [resolvable:$true] %s30
      %36 = dma.hbm_to_vmem [thread:$0]  %s2, 384, %s31, [#allocation5], 128, 128, 8
    $region13: #{_lambda_.1} parent=1 // pred_fallthru
      _
    // Predicated region
    $region14: #{_lambda_.1} parent=1 // pred_check
      _
    $region15: #{_lambda_.1} parent=1 // pred_check_branch
      %38 = sbr.rel (0) target = $region17
    $region16: #{_lambda_.1} parent=1 // pred_region
      _
    $region17: #{_lambda_.1} parent=1 // pred_fallthru
      _
    // Predicated region
    $region18: #{_lambda_.1} parent=1 // pred_check
      _
    $region19: #{_lambda_.1} parent=1 // pred_check_branch
      %40 = sbr.rel (0) target = $region21
    $region20: #{_lambda_.1} parent=1 // pred_region
      %41 = dma.done [#allocation3], 1536
    $region21: #{_lambda_.1} parent=1 // pred_fallthru
      _
    // Predicated region
    $region22: #{_lambda_.1} parent=1 // pred_check
      _
    $region23: #{_lambda_.1} parent=1 // pred_check_branch
      %43 = sbr.rel (0) target = $region25
    $region24: #{_lambda_.1} parent=1 // pred_region
      %44 = dma.done [#allocation5], 384
    $region25: #{_lambda_.1} parent=1 // pred_fallthru
      _
    %v45 = vld [vmem:[%s0] sm:$0x3]
    %s46 = scalar_lea.vmem [#allocation2], 72
    %v47 = vld [vmem:[%s46] sm:$0xff]
    %v48 = vld [vmem:[%s46 + $0x8] sm:$0xff]
    %v49 = vld [vmem:[%s46 + $0x10] sm:$0x1f]
    %v50 = vld [vmem:[#allocation2] sm:$0xff]
    %v51 = vld [vmem:[#allocation2 + $0x8] sm:$0xff]
    %v52 = vld [vmem:[#allocation2 + $0x10] sm:$0x1f]
    %v53 = vlaneseq
    %v54 = vshrl.u32 %v53, 7
    %v55 = vsub.s32 2, %v54
    %v56 = vrot.slane %v52, %v55
    %vm57 = vcmask 146432
    %v59 = vsel %vm57, %v45, 0
    %vm61 = vcmask 1041408
    %v63 = vsel %vm61, %v52, 0
    %65 = vmatprep.subr.mxu0 0.0
    %66 = vmatpush1.msra.mxu0 0.0
    %67 = vmatprep.subr.mxu0 0.0
    %68 = vmatpush1.msra.mxu0 0.0
    %69 = vmatprep.subr.mxu0 0.0
    %70 = vmatpush1.msra.mxu0 0.0
    %71 = vmatprep.subr.mxu0 0.0
    %72 = vmatpush1.msra.mxu0 0.0
    %73 = vmatprep.subr.mxu0 0.0
    %74 = vmatpush1.msra.mxu0 0.0
    %75 = vmatprep.subr.mxu0 0.0
    %76 = vmatpush1.msra.mxu0 0.0
    %77 = vmatprep.subr.mxu0 0.0
    %78 = vmatpush1.msra.mxu0 0.0
    %79 = vmatprep.subr.mxu0 0.0
    %80 = vmatpush1.msra.mxu0 0.0
    %81 = vmatprep.subr.mxu0 0.0
    %82 = vmatpush1.msra.mxu0 0.0
    %83 = vmatprep.subr.mxu0 0.0
    %84 = vmatpush1.msra.mxu0 0.0
    %85 = vmatprep.subr.mxu0 0.0
    %86 = vmatpush1.msra.mxu0 0.0
    %87 = vmatprep.subr.mxu0 0.0
    %88 = vmatpush1.msra.mxu0 0.0
    %89 = vmatprep.subr.mxu0 0.0
    %90 = vmatpush1.msra.mxu0 0.0
    %91 = vmatprep.subr.mxu0 0.0
    %92 = vmatpush1.msra.mxu0 %v63
    %93 = vmatprep.subr.mxu0 0.0
    %94 = vmatpush1.msra.mxu0 %v51
    %95 = vmatprep.subr.mxu0 0.0
    %96 = vmatpush1.msra.mxu0 %v50
    %97 = vmatprep.subr.mxu0 0.0
    %98 = vmatpush2.msra.mxu0 0.0
    %99 = vmatprep.subr.mxu0 0.0
    %100 = vmatpush2.msra.mxu0 0.0
    %101 = vmatprep.subr.mxu0 0.0
    %102 = vmatpush2.msra.mxu0 0.0
    %103 = vmatprep.subr.mxu0 0.0
    %104 = vmatpush2.msra.mxu0 0.0
    %105 = vmatprep.subr.mxu0 0.0
    %106 = vmatpush2.msra.mxu0 0.0
    %107 = vmatprep.subr.mxu0 0.0
    %108 = vmatpush2.msra.mxu0 0.0
    %109 = vmatprep.subr.mxu0 0.0
    %110 = vmatpush2.msra.mxu0 0.0
    %111 = vmatprep.subr.mxu0 0.0
    %112 = vmatpush2.msra.mxu0 0.0
    %113 = vmatprep.subr.mxu0 0.0
    %114 = vmatpush2.msra.mxu0 0.0
    %115 = vmatprep.subr.mxu0 0.0
    %116 = vmatpush2.msra.mxu0 0.0
    %117 = vmatprep.subr.mxu0 0.0
    %118 = vmatpush2.msra.mxu0 0.0
    %119 = vmatprep.subr.mxu0 0.0
    %120 = vmatpush2.msra.mxu0 0.0
    %121 = vmatprep.subr.mxu0 0.0
    %122 = vmatpush2.msra.mxu0 0.0
    %123 = vmatprep.subr.mxu0 0.0
    %124 = vmatpush2.msra.mxu0 0.0
    %125 = vmatprep.subr.mxu0 0.0
    %126 = vmatpush2.msra.mxu0 0.0
    %127 = vmatprep.subr.mxu0 0.0
    %128 = vmatpush2.msra.mxu0 0.0
    %129 = vmatprep.mubr.f32.mxu0 0.0
    %130 = vmatmul.mubr.f32.gmra.mxu0 %v59
    %v131 = vpop.f32.mrf.mxu0
    %v132 = vadd.f32 %v56, %v131
    %v133 = vpop.f32.mrf.mxu0
    %134 = vdwg.mxu0
    %vm135 = vcmask 140288
    %v136 = vsel %vm135, %v132, 0.0
    %v137 = vrot.slane %v136, 4
    %v138 = vadd.f32 %v136, %v137
    %v139 = vrot.slane %v138, 2
    %v140 = vadd.f32 %v138, %v139
    %v141 = vrot.slane %v140, 1
    %v142 = vadd.f32 %v140, %v141
    %v144 = vsel %vm57, %v142, 0
    %v147 = vsel %vm61, %v49, 0
    %149 = vmatprep.subr.mxu0 0.0
    %150 = vmatpush1.msra.mxu0 0.0
    %151 = vmatprep.subr.mxu0 0.0
    %152 = vmatpush1.msra.mxu0 0.0
    %153 = vmatprep.subr.mxu0 0.0
    %154 = vmatpush1.msra.mxu0 0.0
    %155 = vmatprep.subr.mxu0 0.0
    %156 = vmatpush1.msra.mxu0 0.0
    %157 = vmatprep.subr.mxu0 0.0
    %158 = vmatpush1.msra.mxu0 0.0
    %159 = vmatprep.subr.mxu0 0.0
    %160 = vmatpush1.msra.mxu0 0.0
    %161 = vmatprep.subr.mxu0 0.0
    %162 = vmatpush1.msra.mxu0 0.0
    %163 = vmatprep.subr.mxu0 0.0
    %164 = vmatpush1.msra.mxu0 0.0
    %165 = vmatprep.subr.mxu0 0.0
    %166 = vmatpush1.msra.mxu0 0.0
    %167 = vmatprep.subr.mxu0 0.0
    %168 = vmatpush1.msra.mxu0 0.0
    %169 = vmatprep.subr.mxu0 0.0
    %170 = vmatpush1.msra.mxu0 0.0
    %171 = vmatprep.subr.mxu0 0.0
    %172 = vmatpush1.msra.mxu0 0.0
    %173 = vmatprep.subr.mxu0 0.0
    %174 = vmatpush1.msra.mxu0 0.0
    %175 = vmatprep.subr.mxu0 0.0
    %176 = vmatpush1.msra.mxu0 %v147
    %177 = vmatprep.subr.mxu0 0.0
    %178 = vmatpush1.msra.mxu0 %v48
    %179 = vmatprep.subr.mxu0 0.0
    %180 = vmatpush1.msra.mxu0 %v47
    %181 = vmatprep.subr.mxu0 0.0
    %182 = vmatpush2.msra.mxu0 0.0
    %183 = vmatprep.subr.mxu0 0.0
    %184 = vmatpush2.msra.mxu0 0.0
    %185 = vmatprep.subr.mxu0 0.0
    %186 = vmatpush2.msra.mxu0 0.0
    %187 = vmatprep.subr.mxu0 0.0
    %188 = vmatpush2.msra.mxu0 0.0
    %189 = vmatprep.subr.mxu0 0.0
    %190 = vmatpush2.msra.mxu0 0.0
    %191 = vmatprep.subr.mxu0 0.0
    %192 = vmatpush2.msra.mxu0 0.0
    %193 = vmatprep.subr.mxu0 0.0
    %194 = vmatpush2.msra.mxu0 0.0
    %195 = vmatprep.subr.mxu0 0.0
    %196 = vmatpush2.msra.mxu0 0.0
    %197 = vmatprep.subr.mxu0 0.0
    %198 = vmatpush2.msra.mxu0 0.0
    %199 = vmatprep.subr.mxu0 0.0
    %200 = vmatpush2.msra.mxu0 0.0
    %201 = vmatprep.subr.mxu0 0.0
    %202 = vmatpush2.msra.mxu0 0.0
    %203 = vmatprep.subr.mxu0 0.0
    %204 = vmatpush2.msra.mxu0 0.0
    %205 = vmatprep.subr.mxu0 0.0
    %206 = vmatpush2.msra.mxu0 0.0
    %207 = vmatprep.subr.mxu0 0.0
    %208 = vmatpush2.msra.mxu0 0.0
    %209 = vmatprep.subr.mxu0 0.0
    %210 = vmatpush2.msra.mxu0 0.0
    %211 = vmatprep.subr.mxu0 0.0
    %212 = vmatpush2.msra.mxu0 0.0
    %213 = vmatprep.mubr.f32.mxu0 0.0
    %214 = vmatmul.mubr.f32.gmra.mxu0 %v144
    %v215 = vpop.f32.mrf.mxu0
    %v216 = vadd.f32 0.0, %v215
    %v217 = vpop.f32.mrf.mxu0
    %218 = vdwg.mxu0
    %v219 = vmul.f32 %v216, 0.16666667
    %v220 = vlaneseq
    %v221 = vshrl.u32 %v220, 7
    %v222 = vsub.s32 0, %v221
    %v223 = vrot.slane %v219, %v222
    %v224 = vsub.f32 %v132, %v223
    %v225 = vmul.f32 %v224, %v224
    %v226 = vsel %vm135, %v225, 0.0
    %v227 = vrot.slane %v226, 4
    %v228 = vadd.f32 %v226, %v227
    %v229 = vrot.slane %v228, 2
    %v230 = vadd.f32 %v228, %v229
    %v231 = vrot.slane %v230, 1
    %v232 = vadd.f32 %v230, %v231
    %v234 = vsel %vm57, %v232, 0
    %236 = vmatprep.subr.mxu0 0.0
    %237 = vmatpush1.msra.mxu0 0.0
    %238 = vmatprep.subr.mxu0 0.0
    %239 = vmatpush1.msra.mxu0 0.0
    %240 = vmatprep.subr.mxu0 0.0
    %241 = vmatpush1.msra.mxu0 0.0
    %242 = vmatprep.subr.mxu0 0.0
    %243 = vmatpush1.msra.mxu0 0.0
    %244 = vmatprep.subr.mxu0 0.0
    %245 = vmatpush1.msra.mxu0 0.0
    %246 = vmatprep.subr.mxu0 0.0
    %247 = vmatpush1.msra.mxu0 0.0
    %248 = vmatprep.subr.mxu0 0.0
    %249 = vmatpush1.msra.mxu0 0.0
    %250 = vmatprep.subr.mxu0 0.0
    %251 = vmatpush1.msra.mxu0 0.0
    %252 = vmatprep.subr.mxu0 0.0
    %253 = vmatpush1.msra.mxu0 0.0
    %254 = vmatprep.subr.mxu0 0.0
    %255 = vmatpush1.msra.mxu0 0.0
    %256 = vmatprep.subr.mxu0 0.0
    %257 = vmatpush1.msra.mxu0 0.0
    %258 = vmatprep.subr.mxu0 0.0
    %259 = vmatpush1.msra.mxu0 0.0
    %260 = vmatprep.subr.mxu0 0.0
    %261 = vmatpush1.msra.mxu0 0.0
    %262 = vmatprep.subr.mxu0 0.0
    %263 = vmatpush1.msra.mxu0 %v147
    %264 = vmatprep.subr.mxu0 0.0
    %265 = vmatpush1.msra.mxu0 %v48
    %266 = vmatprep.subr.mxu0 0.0
    %267 = vmatpush1.msra.mxu0 %v47
    %268 = vmatprep.subr.mxu0 0.0
    %269 = vmatpush2.msra.mxu0 0.0
    %270 = vmatprep.subr.mxu0 0.0
    %271 = vmatpush2.msra.mxu0 0.0
    %272 = vmatprep.subr.mxu0 0.0
    %273 = vmatpush2.msra.mxu0 0.0
    %274 = vmatprep.subr.mxu0 0.0
    %275 = vmatpush2.msra.mxu0 0.0
    %276 = vmatprep.subr.mxu0 0.0
    %277 = vmatpush2.msra.mxu0 0.0
    %278 = vmatprep.subr.mxu0 0.0
    %279 = vmatpush2.msra.mxu0 0.0
    %280 = vmatprep.subr.mxu0 0.0
    %281 = vmatpush2.msra.mxu0 0.0
    %282 = vmatprep.subr.mxu0 0.0
    %283 = vmatpush2.msra.mxu0 0.0
    %284 = vmatprep.subr.mxu0 0.0
    %285 = vmatpush2.msra.mxu0 0.0
    %286 = vmatprep.subr.mxu0 0.0
    %287 = vmatpush2.msra.mxu0 0.0
    %288 = vmatprep.subr.mxu0 0.0
    %289 = vmatpush2.msra.mxu0 0.0
    %290 = vmatprep.subr.mxu0 0.0
    %291 = vmatpush2.msra.mxu0 0.0
    %292 = vmatprep.subr.mxu0 0.0
    %293 = vmatpush2.msra.mxu0 0.0
    %294 = vmatprep.subr.mxu0 0.0
    %295 = vmatpush2.msra.mxu0 0.0
    %296 = vmatprep.subr.mxu0 0.0
    %297 = vmatpush2.msra.mxu0 0.0
    %298 = vmatprep.subr.mxu0 0.0
    %299 = vmatpush2.msra.mxu0 0.0
    %300 = vmatprep.mubr.f32.mxu0 0.0
    %301 = vmatmul.mubr.f32.gmra.mxu0 %v234
    %v302 = vpop.f32.mrf.mxu0
    %v303 = vadd.f32 0.0, %v302
    %v304 = vpop.f32.mrf.mxu0
    %305 = vdwg.mxu0
    %v306 = vmul.f32 %v303, 0.16666667
    %v307 = vadd.f32 %v306, 1e-05
    %v308 = vrsqrt.pop %v307
    %v309 = vlaneseq
    %v310 = vshrl.u32 %v309, 7
    %v311 = vsub.s32 0, %v310
    %v312 = vrot.slane %v308, %v311
    %v313 = vmul.f32 %v224, %v312
    %v314 = vlaneseq
    %v315 = vshrl.u32 %v314, 7
    %v316 = vsub.s32 3, %v315
    %v317 = vrot.slane %v52, %v316
    %v318 = vmul.f32 %v313, %v317
    %v319 = vlaneseq
    %v320 = vshrl.u32 %v319, 7
    %v321 = vsub.s32 4, %v320
    %v322 = vrot.slane %v52, %v321
    %v323 = vadd.f32 %v318, %v322
    %v324 = vmax.f32 %v323, 0.0
    %s325 = scalar_lea.vmem [#allocation2], 24
    %v326 = vld [vmem:[%s325] sm:$0xff]
    %v327 = vld [vmem:[%s325 + $0x8] sm:$0xff]
    %v328 = vld [vmem:[%s325 + $0x10] sm:$0x1f]
    %v329 = vlaneseq
    %v330 = vshrl.u32 %v329, 7
    %v331 = vsub.s32 2, %v330
    %v332 = vrot.slane %v328, %v331
    %v334 = vsel %vm57, %v324, 0
    %v337 = vsel %vm61, %v328, 0
    %339 = vmatprep.subr.mxu0 0.0
    %340 = vmatpush1.msra.mxu0 0.0
    %341 = vmatprep.subr.mxu0 0.0
    %342 = vmatpush1.msra.mxu0 0.0
    %343 = vmatprep.subr.mxu0 0.0
    %344 = vmatpush1.msra.mxu0 0.0
    %345 = vmatprep.subr.mxu0 0.0
    %346 = vmatpush1.msra.mxu0 0.0
    %347 = vmatprep.subr.mxu0 0.0
    %348 = vmatpush1.msra.mxu0 0.0
    %349 = vmatprep.subr.mxu0 0.0
    %350 = vmatpush1.msra.mxu0 0.0
    %351 = vmatprep.subr.mxu0 0.0
    %352 = vmatpush1.msra.mxu0 0.0
    %353 = vmatprep.subr.mxu0 0.0
    %354 = vmatpush1.msra.mxu0 0.0
    %355 = vmatprep.subr.mxu0 0.0
    %356 = vmatpush1.msra.mxu0 0.0
    %357 = vmatprep.subr.mxu0 0.0
    %358 = vmatpush1.msra.mxu0 0.0
    %359 = vmatprep.subr.mxu0 0.0
    %360 = vmatpush1.msra.mxu0 0.0
    %361 = vmatprep.subr.mxu0 0.0
    %362 = vmatpush1.msra.mxu0 0.0
    %363 = vmatprep.subr.mxu0 0.0
    %364 = vmatpush1.msra.mxu0 0.0
    %365 = vmatprep.subr.mxu0 0.0
    %366 = vmatpush1.msra.mxu0 %v337
    %367 = vmatprep.subr.mxu0 0.0
    %368 = vmatpush1.msra.mxu0 %v327
    %369 = vmatprep.subr.mxu0 0.0
    %370 = vmatpush1.msra.mxu0 %v326
    %371 = vmatprep.subr.mxu0 0.0
    %372 = vmatpush2.msra.mxu0 0.0
    %373 = vmatprep.subr.mxu0 0.0
    %374 = vmatpush2.msra.mxu0 0.0
    %375 = vmatprep.subr.mxu0 0.0
    %376 = vmatpush2.msra.mxu0 0.0
    %377 = vmatprep.subr.mxu0 0.0
    %378 = vmatpush2.msra.mxu0 0.0
    %379 = vmatprep.subr.mxu0 0.0
    %380 = vmatpush2.msra.mxu0 0.0
    %381 = vmatprep.subr.mxu0 0.0
    %382 = vmatpush2.msra.mxu0 0.0
    %383 = vmatprep.subr.mxu0 0.0
    %384 = vmatpush2.msra.mxu0 0.0
    %385 = vmatprep.subr.mxu0 0.0
    %386 = vmatpush2.msra.mxu0 0.0
    %387 = vmatprep.subr.mxu0 0.0
    %388 = vmatpush2.msra.mxu0 0.0
    %389 = vmatprep.subr.mxu0 0.0
    %390 = vmatpush2.msra.mxu0 0.0
    %391 = vmatprep.subr.mxu0 0.0
    %392 = vmatpush2.msra.mxu0 0.0
    %393 = vmatprep.subr.mxu0 0.0
    %394 = vmatpush2.msra.mxu0 0.0
    %395 = vmatprep.subr.mxu0 0.0
    %396 = vmatpush2.msra.mxu0 0.0
    %397 = vmatprep.subr.mxu0 0.0
    %398 = vmatpush2.msra.mxu0 0.0
    %399 = vmatprep.subr.mxu0 0.0
    %400 = vmatpush2.msra.mxu0 0.0
    %401 = vmatprep.subr.mxu0 0.0
    %402 = vmatpush2.msra.mxu0 0.0
    %403 = vmatprep.mubr.f32.mxu0 0.0
    %404 = vmatmul.mubr.f32.gmra.mxu0 %v334
    %v405 = vpop.f32.mrf.mxu0
    %v406 = vadd.f32 %v332, %v405
    %v407 = vpop.f32.mrf.mxu0
    %408 = vdwg.mxu0
    %v409 = vsel %vm135, %v406, 0.0
    %v410 = vrot.slane %v409, 4
    %v411 = vadd.f32 %v409, %v410
    %v412 = vrot.slane %v411, 2
    %v413 = vadd.f32 %v411, %v412
    %v414 = vrot.slane %v413, 1
    %v415 = vadd.f32 %v413, %v414
    %v417 = vsel %vm57, %v415, 0
    %419 = vmatprep.subr.mxu0 0.0
    %420 = vmatpush1.msra.mxu0 0.0
    %421 = vmatprep.subr.mxu0 0.0
    %422 = vmatpush1.msra.mxu0 0.0
    %423 = vmatprep.subr.mxu0 0.0
    %424 = vmatpush1.msra.mxu0 0.0
    %425 = vmatprep.subr.mxu0 0.0
    %426 = vmatpush1.msra.mxu0 0.0
    %427 = vmatprep.subr.mxu0 0.0
    %428 = vmatpush1.msra.mxu0 0.0
    %429 = vmatprep.subr.mxu0 0.0
    %430 = vmatpush1.msra.mxu0 0.0
    %431 = vmatprep.subr.mxu0 0.0
    %432 = vmatpush1.msra.mxu0 0.0
    %433 = vmatprep.subr.mxu0 0.0
    %434 = vmatpush1.msra.mxu0 0.0
    %435 = vmatprep.subr.mxu0 0.0
    %436 = vmatpush1.msra.mxu0 0.0
    %437 = vmatprep.subr.mxu0 0.0
    %438 = vmatpush1.msra.mxu0 0.0
    %439 = vmatprep.subr.mxu0 0.0
    %440 = vmatpush1.msra.mxu0 0.0
    %441 = vmatprep.subr.mxu0 0.0
    %442 = vmatpush1.msra.mxu0 0.0
    %443 = vmatprep.subr.mxu0 0.0
    %444 = vmatpush1.msra.mxu0 0.0
    %445 = vmatprep.subr.mxu0 0.0
    %446 = vmatpush1.msra.mxu0 %v147
    %447 = vmatprep.subr.mxu0 0.0
    %448 = vmatpush1.msra.mxu0 %v48
    %449 = vmatprep.subr.mxu0 0.0
    %450 = vmatpush1.msra.mxu0 %v47
    %451 = vmatprep.subr.mxu0 0.0
    %452 = vmatpush2.msra.mxu0 0.0
    %453 = vmatprep.subr.mxu0 0.0
    %454 = vmatpush2.msra.mxu0 0.0
    %455 = vmatprep.subr.mxu0 0.0
    %456 = vmatpush2.msra.mxu0 0.0
    %457 = vmatprep.subr.mxu0 0.0
    %458 = vmatpush2.msra.mxu0 0.0
    %459 = vmatprep.subr.mxu0 0.0
    %460 = vmatpush2.msra.mxu0 0.0
    %461 = vmatprep.subr.mxu0 0.0
    %462 = vmatpush2.msra.mxu0 0.0
    %463 = vmatprep.subr.mxu0 0.0
    %464 = vmatpush2.msra.mxu0 0.0
    %465 = vmatprep.subr.mxu0 0.0
    %466 = vmatpush2.msra.mxu0 0.0
    %467 = vmatprep.subr.mxu0 0.0
    %468 = vmatpush2.msra.mxu0 0.0
    %469 = vmatprep.subr.mxu0 0.0
    %470 = vmatpush2.msra.mxu0 0.0
    %471 = vmatprep.subr.mxu0 0.0
    %472 = vmatpush2.msra.mxu0 0.0
    %473 = vmatprep.subr.mxu0 0.0
    %474 = vmatpush2.msra.mxu0 0.0
    %475 = vmatprep.subr.mxu0 0.0
    %476 = vmatpush2.msra.mxu0 0.0
    %477 = vmatprep.subr.mxu0 0.0
    %478 = vmatpush2.msra.mxu0 0.0
    %479 = vmatprep.subr.mxu0 0.0
    %480 = vmatpush2.msra.mxu0 0.0
    %481 = vmatprep.subr.mxu0 0.0
    %482 = vmatpush2.msra.mxu0 0.0
    %483 = vmatprep.mubr.f32.mxu0 0.0
    %484 = vmatmul.mubr.f32.gmra.mxu0 %v417
    %v485 = vpop.f32.mrf.mxu0
    %v486 = vadd.f32 0.0, %v485
    %v487 = vpop.f32.mrf.mxu0
    %488 = vdwg.mxu0
    %v489 = vmul.f32 %v486, 0.16666667
    %v490 = vlaneseq
    %v491 = vshrl.u32 %v490, 7
    %v492 = vsub.s32 0, %v491
    %v493 = vrot.slane %v489, %v492
    %v494 = vsub.f32 %v406, %v493
    %v495 = vmul.f32 %v494, %v494
    %v496 = vsel %vm135, %v495, 0.0
    %v497 = vrot.slane %v496, 4
    %v498 = vadd.f32 %v496, %v497
    %v499 = vrot.slane %v498, 2
    %v500 = vadd.f32 %v498, %v499
    %v501 = vrot.slane %v500, 1
    %v502 = vadd.f32 %v500, %v501
    %v504 = vsel %vm57, %v502, 0
    %506 = vmatprep.subr.mxu0 0.0
    %507 = vmatpush1.msra.mxu0 0.0
    %508 = vmatprep.subr.mxu0 0.0
    %509 = vmatpush1.msra.mxu0 0.0
    %510 = vmatprep.subr.mxu0 0.0
    %511 = vmatpush1.msra.mxu0 0.0
    %512 = vmatprep.subr.mxu0 0.0
    %513 = vmatpush1.msra.mxu0 0.0
    %514 = vmatprep.subr.mxu0 0.0
    %515 = vmatpush1.msra.mxu0 0.0
    %516 = vmatprep.subr.mxu0 0.0
    %517 = vmatpush1.msra.mxu0 0.0
    %518 = vmatprep.subr.mxu0 0.0
    %519 = vmatpush1.msra.mxu0 0.0
    %520 = vmatprep.subr.mxu0 0.0
    %521 = vmatpush1.msra.mxu0 0.0
    %522 = vmatprep.subr.mxu0 0.0
    %523 = vmatpush1.msra.mxu0 0.0
    %524 = vmatprep.subr.mxu0 0.0
    %525 = vmatpush1.msra.mxu0 0.0
    %526 = vmatprep.subr.mxu0 0.0
    %527 = vmatpush1.msra.mxu0 0.0
    %528 = vmatprep.subr.mxu0 0.0
    %529 = vmatpush1.msra.mxu0 0.0
    %530 = vmatprep.subr.mxu0 0.0
    %531 = vmatpush1.msra.mxu0 0.0
    %532 = vmatprep.subr.mxu0 0.0
    %533 = vmatpush1.msra.mxu0 %v147
    %534 = vmatprep.subr.mxu0 0.0
    %535 = vmatpush1.msra.mxu0 %v48
    %536 = vmatprep.subr.mxu0 0.0
    %537 = vmatpush1.msra.mxu0 %v47
    %538 = vmatprep.subr.mxu0 0.0
    %539 = vmatpush2.msra.mxu0 0.0
    %540 = vmatprep.subr.mxu0 0.0
    %541 = vmatpush2.msra.mxu0 0.0
    %542 = vmatprep.subr.mxu0 0.0
    %543 = vmatpush2.msra.mxu0 0.0
    %544 = vmatprep.subr.mxu0 0.0
    %545 = vmatpush2.msra.mxu0 0.0
    %546 = vmatprep.subr.mxu0 0.0
    %547 = vmatpush2.msra.mxu0 0.0
    %548 = vmatprep.subr.mxu0 0.0
    %549 = vmatpush2.msra.mxu0 0.0
    %550 = vmatprep.subr.mxu0 0.0
    %551 = vmatpush2.msra.mxu0 0.0
    %552 = vmatprep.subr.mxu0 0.0
    %553 = vmatpush2.msra.mxu0 0.0
    %554 = vmatprep.subr.mxu0 0.0
    %555 = vmatpush2.msra.mxu0 0.0
    %556 = vmatprep.subr.mxu0 0.0
    %557 = vmatpush2.msra.mxu0 0.0
    %558 = vmatprep.subr.mxu0 0.0
    %559 = vmatpush2.msra.mxu0 0.0
    %560 = vmatprep.subr.mxu0 0.0
    %561 = vmatpush2.msra.mxu0 0.0
    %562 = vmatprep.subr.mxu0 0.0
    %563 = vmatpush2.msra.mxu0 0.0
    %564 = vmatprep.subr.mxu0 0.0
    %565 = vmatpush2.msra.mxu0 0.0
    %566 = vmatprep.subr.mxu0 0.0
    %567 = vmatpush2.msra.mxu0 0.0
    %568 = vmatprep.subr.mxu0 0.0
    %569 = vmatpush2.msra.mxu0 0.0
    %570 = vmatprep.mubr.f32.mxu0 0.0
    %571 = vmatmul.mubr.f32.gmra.mxu0 %v504
    %v572 = vpop.f32.mrf.mxu0
    %v573 = vadd.f32 0.0, %v572
    %v574 = vpop.f32.mrf.mxu0
    %575 = vdwg.mxu0
    %v576 = vmul.f32 %v573, 0.16666667
    %v577 = vadd.f32 %v576, 1e-05
    %v578 = vrsqrt.pop %v577
    %v579 = vlaneseq
    %v580 = vshrl.u32 %v579, 7
    %v581 = vsub.s32 0, %v580
    %v582 = vrot.slane %v578, %v581
    %v583 = vmul.f32 %v494, %v582
    %v584 = vlaneseq
    %v585 = vshrl.u32 %v584, 7
    %v586 = vsub.s32 3, %v585
    %v587 = vrot.slane %v328, %v586
    %v588 = vmul.f32 %v583, %v587
    %v589 = vlaneseq
    %v590 = vshrl.u32 %v589, 7
    %v591 = vsub.s32 4, %v590
    %v592 = vrot.slane %v328, %v591
    %v593 = vadd.f32 %v588, %v592
    %v594 = vmax.f32 %v593, 0.0
    %s595 = scalar_lea.vmem [#allocation2], 48
    %v596 = vld [vmem:[%s595] sm:$0xff]
    %v597 = vld [vmem:[%s595 + $0x8] sm:$0xff]
    %v598 = vld [vmem:[%s595 + $0x10] sm:$0x1f]
    %v599 = vlaneseq
    %v600 = vshrl.u32 %v599, 7
    %v601 = vsub.s32 2, %v600
    %v602 = vrot.slane %v598, %v601
    %v604 = vsel %vm57, %v594, 0
    %v607 = vsel %vm61, %v598, 0
    %609 = vmatprep.subr.mxu0 0.0
    %610 = vmatpush1.msra.mxu0 0.0
    %611 = vmatprep.subr.mxu0 0.0
    %612 = vmatpush1.msra.mxu0 0.0
    %613 = vmatprep.subr.mxu0 0.0
    %614 = vmatpush1.msra.mxu0 0.0
    %615 = vmatprep.subr.mxu0 0.0
    %616 = vmatpush1.msra.mxu0 0.0
    %617 = vmatprep.subr.mxu0 0.0
    %618 = vmatpush1.msra.mxu0 0.0
    %619 = vmatprep.subr.mxu0 0.0
    %620 = vmatpush1.msra.mxu0 0.0
    %621 = vmatprep.subr.mxu0 0.0
    %622 = vmatpush1.msra.mxu0 0.0
    %623 = vmatprep.subr.mxu0 0.0
    %624 = vmatpush1.msra.mxu0 0.0
    %625 = vmatprep.subr.mxu0 0.0
    %626 = vmatpush1.msra.mxu0 0.0
    %627 = vmatprep.subr.mxu0 0.0
    %628 = vmatpush1.msra.mxu0 0.0
    %629 = vmatprep.subr.mxu0 0.0
    %630 = vmatpush1.msra.mxu0 0.0
    %631 = vmatprep.subr.mxu0 0.0
    %632 = vmatpush1.msra.mxu0 0.0
    %633 = vmatprep.subr.mxu0 0.0
    %634 = vmatpush1.msra.mxu0 0.0
    %635 = vmatprep.subr.mxu0 0.0
    %636 = vmatpush1.msra.mxu0 %v607
    %637 = vmatprep.subr.mxu0 0.0
    %638 = vmatpush1.msra.mxu0 %v597
    %639 = vmatprep.subr.mxu0 0.0
    %640 = vmatpush1.msra.mxu0 %v596
    %641 = vmatprep.subr.mxu0 0.0
    %642 = vmatpush2.msra.mxu0 0.0
    %643 = vmatprep.subr.mxu0 0.0
    %644 = vmatpush2.msra.mxu0 0.0
    %645 = vmatprep.subr.mxu0 0.0
    %646 = vmatpush2.msra.mxu0 0.0
    %647 = vmatprep.subr.mxu0 0.0
    %648 = vmatpush2.msra.mxu0 0.0
    %649 = vmatprep.subr.mxu0 0.0
    %650 = vmatpush2.msra.mxu0 0.0
    %651 = vmatprep.subr.mxu0 0.0
    %652 = vmatpush2.msra.mxu0 0.0
    %653 = vmatprep.subr.mxu0 0.0
    %654 = vmatpush2.msra.mxu0 0.0
    %655 = vmatprep.subr.mxu0 0.0
    %656 = vmatpush2.msra.mxu0 0.0
    %657 = vmatprep.subr.mxu0 0.0
    %658 = vmatpush2.msra.mxu0 0.0
    %659 = vmatprep.subr.mxu0 0.0
    %660 = vmatpush2.msra.mxu0 0.0
    %661 = vmatprep.subr.mxu0 0.0
    %662 = vmatpush2.msra.mxu0 0.0
    %663 = vmatprep.subr.mxu0 0.0
    %664 = vmatpush2.msra.mxu0 0.0
    %665 = vmatprep.subr.mxu0 0.0
    %666 = vmatpush2.msra.mxu0 0.0
    %667 = vmatprep.subr.mxu0 0.0
    %668 = vmatpush2.msra.mxu0 0.0
    %669 = vmatprep.subr.mxu0 0.0
    %670 = vmatpush2.msra.mxu0 0.0
    %671 = vmatprep.subr.mxu0 0.0
    %672 = vmatpush2.msra.mxu0 0.0
    %673 = vmatprep.mubr.f32.mxu0 0.0
    %674 = vmatmul.mubr.f32.gmra.mxu0 %v604
    %v675 = vpop.f32.mrf.mxu0
    %v676 = vadd.f32 %v602, %v675
    %v677 = vpop.f32.mrf.mxu0
    %678 = vdwg.mxu0
    %v679 = vsel %vm135, %v676, 0.0
    %v680 = vrot.slane %v679, 4
    %v681 = vadd.f32 %v679, %v680
    %v682 = vrot.slane %v681, 2
    %v683 = vadd.f32 %v681, %v682
    %v684 = vrot.slane %v683, 1
    %v685 = vadd.f32 %v683, %v684
    %v687 = vsel %vm57, %v685, 0
    %689 = vmatprep.subr.mxu0 0.0
    %690 = vmatpush1.msra.mxu0 0.0
    %691 = vmatprep.subr.mxu0 0.0
    %692 = vmatpush1.msra.mxu0 0.0
    %693 = vmatprep.subr.mxu0 0.0
    %694 = vmatpush1.msra.mxu0 0.0
    %695 = vmatprep.subr.mxu0 0.0
    %696 = vmatpush1.msra.mxu0 0.0
    %697 = vmatprep.subr.mxu0 0.0
    %698 = vmatpush1.msra.mxu0 0.0
    %699 = vmatprep.subr.mxu0 0.0
    %700 = vmatpush1.msra.mxu0 0.0
    %701 = vmatprep.subr.mxu0 0.0
    %702 = vmatpush1.msra.mxu0 0.0
    %703 = vmatprep.subr.mxu0 0.0
    %704 = vmatpush1.msra.mxu0 0.0
    %705 = vmatprep.subr.mxu0 0.0
    %706 = vmatpush1.msra.mxu0 0.0
    %707 = vmatprep.subr.mxu0 0.0
    %708 = vmatpush1.msra.mxu0 0.0
    %709 = vmatprep.subr.mxu0 0.0
    %710 = vmatpush1.msra.mxu0 0.0
    %711 = vmatprep.subr.mxu0 0.0
    %712 = vmatpush1.msra.mxu0 0.0
    %713 = vmatprep.subr.mxu0 0.0
    %714 = vmatpush1.msra.mxu0 0.0
    %715 = vmatprep.subr.mxu0 0.0
    %716 = vmatpush1.msra.mxu0 %v147
    %717 = vmatprep.subr.mxu0 0.0
    %718 = vmatpush1.msra.mxu0 %v48
    %719 = vmatprep.subr.mxu0 0.0
    %720 = vmatpush1.msra.mxu0 %v47
    %721 = vmatprep.subr.mxu0 0.0
    %722 = vmatpush2.msra.mxu0 0.0
    %723 = vmatprep.subr.mxu0 0.0
    %724 = vmatpush2.msra.mxu0 0.0
    %725 = vmatprep.subr.mxu0 0.0
    %726 = vmatpush2.msra.mxu0 0.0
    %727 = vmatprep.subr.mxu0 0.0
    %728 = vmatpush2.msra.mxu0 0.0
    %729 = vmatprep.subr.mxu0 0.0
    %730 = vmatpush2.msra.mxu0 0.0
    %731 = vmatprep.subr.mxu0 0.0
    %732 = vmatpush2.msra.mxu0 0.0
    %733 = vmatprep.subr.mxu0 0.0
    %734 = vmatpush2.msra.mxu0 0.0
    %735 = vmatprep.subr.mxu0 0.0
    %736 = vmatpush2.msra.mxu0 0.0
    %737 = vmatprep.subr.mxu0 0.0
    %738 = vmatpush2.msra.mxu0 0.0
    %739 = vmatprep.subr.mxu0 0.0
    %740 = vmatpush2.msra.mxu0 0.0
    %741 = vmatprep.subr.mxu0 0.0
    %742 = vmatpush2.msra.mxu0 0.0
    %743 = vmatprep.subr.mxu0 0.0
    %744 = vmatpush2.msra.mxu0 0.0
    %745 = vmatprep.subr.mxu0 0.0
    %746 = vmatpush2.msra.mxu0 0.0
    %747 = vmatprep.subr.mxu0 0.0
    %748 = vmatpush2.msra.mxu0 0.0
    %749 = vmatprep.subr.mxu0 0.0
    %750 = vmatpush2.msra.mxu0 0.0
    %751 = vmatprep.subr.mxu0 0.0
    %752 = vmatpush2.msra.mxu0 0.0
    %753 = vmatprep.mubr.f32.mxu0 0.0
    %754 = vmatmul.mubr.f32.gmra.mxu0 %v687
    %v755 = vpop.f32.mrf.mxu0
    %v756 = vadd.f32 0.0, %v755
    %v757 = vpop.f32.mrf.mxu0
    %758 = vdwg.mxu0
    %v759 = vmul.f32 %v756, 0.16666667
    %v760 = vlaneseq
    %v761 = vshrl.u32 %v760, 7
    %v762 = vsub.s32 0, %v761
    %v763 = vrot.slane %v759, %v762
    %v764 = vsub.f32 %v676, %v763
    %v765 = vmul.f32 %v764, %v764
    %v766 = vsel %vm135, %v765, 0.0
    %v767 = vrot.slane %v766, 4
    %v768 = vadd.f32 %v766, %v767
    %v769 = vrot.slane %v768, 2
    %v770 = vadd.f32 %v768, %v769
    %v771 = vrot.slane %v770, 1
    %v772 = vadd.f32 %v770, %v771
    %v774 = vsel %vm57, %v772, 0
    %776 = vmatprep.subr.mxu0 0.0
    %777 = vmatpush1.msra.mxu0 0.0
    %778 = vmatprep.subr.mxu0 0.0
    %779 = vmatpush1.msra.mxu0 0.0
    %780 = vmatprep.subr.mxu0 0.0
    %781 = vmatpush1.msra.mxu0 0.0
    %782 = vmatprep.subr.mxu0 0.0
    %783 = vmatpush1.msra.mxu0 0.0
    %784 = vmatprep.subr.mxu0 0.0
    %785 = vmatpush1.msra.mxu0 0.0
    %786 = vmatprep.subr.mxu0 0.0
    %787 = vmatpush1.msra.mxu0 0.0
    %788 = vmatprep.subr.mxu0 0.0
    %789 = vmatpush1.msra.mxu0 0.0
    %790 = vmatprep.subr.mxu0 0.0
    %791 = vmatpush1.msra.mxu0 0.0
    %792 = vmatprep.subr.mxu0 0.0
    %793 = vmatpush1.msra.mxu0 0.0
    %794 = vmatprep.subr.mxu0 0.0
    %795 = vmatpush1.msra.mxu0 0.0
    %796 = vmatprep.subr.mxu0 0.0
    %797 = vmatpush1.msra.mxu0 0.0
    %798 = vmatprep.subr.mxu0 0.0
    %799 = vmatpush1.msra.mxu0 0.0
    %800 = vmatprep.subr.mxu0 0.0
    %801 = vmatpush1.msra.mxu0 0.0
    %802 = vmatprep.subr.mxu0 0.0
    %803 = vmatpush1.msra.mxu0 %v147
    %804 = vmatprep.subr.mxu0 0.0
    %805 = vmatpush1.msra.mxu0 %v48
    %806 = vmatprep.subr.mxu0 0.0
    %807 = vmatpush1.msra.mxu0 %v47
    %808 = vmatprep.subr.mxu0 0.0
    %809 = vmatpush2.msra.mxu0 0.0
    %810 = vmatprep.subr.mxu0 0.0
    %811 = vmatpush2.msra.mxu0 0.0
    %812 = vmatprep.subr.mxu0 0.0
    %813 = vmatpush2.msra.mxu0 0.0
    %814 = vmatprep.subr.mxu0 0.0
    %815 = vmatpush2.msra.mxu0 0.0
    %816 = vmatprep.subr.mxu0 0.0
    %817 = vmatpush2.msra.mxu0 0.0
    %818 = vmatprep.subr.mxu0 0.0
    %819 = vmatpush2.msra.mxu0 0.0
    %820 = vmatprep.subr.mxu0 0.0
    %821 = vmatpush2.msra.mxu0 0.0
    %822 = vmatprep.subr.mxu0 0.0
    %823 = vmatpush2.msra.mxu0 0.0
    %824 = vmatprep.subr.mxu0 0.0
    %825 = vmatpush2.msra.mxu0 0.0
    %826 = vmatprep.subr.mxu0 0.0
    %827 = vmatpush2.msra.mxu0 0.0
    %828 = vmatprep.subr.mxu0 0.0
    %829 = vmatpush2.msra.mxu0 0.0
    %830 = vmatprep.subr.mxu0 0.0
    %831 = vmatpush2.msra.mxu0 0.0
    %832 = vmatprep.subr.mxu0 0.0
    %833 = vmatpush2.msra.mxu0 0.0
    %834 = vmatprep.subr.mxu0 0.0
    %835 = vmatpush2.msra.mxu0 0.0
    %836 = vmatprep.subr.mxu0 0.0
    %837 = vmatpush2.msra.mxu0 0.0
    %838 = vmatprep.subr.mxu0 0.0
    %839 = vmatpush2.msra.mxu0 0.0
    %840 = vmatprep.mubr.f32.mxu0 0.0
    %841 = vmatmul.mubr.f32.gmra.mxu0 %v774
    %v842 = vpop.f32.mrf.mxu0
    %v843 = vadd.f32 0.0, %v842
    %v844 = vpop.f32.mrf.mxu0
    %845 = vdwg.mxu0
    %v846 = vmul.f32 %v843, 0.16666667
    %v847 = vadd.f32 %v846, 1e-05
    %v848 = vrsqrt.pop %v847
    %v849 = vlaneseq
    %v850 = vshrl.u32 %v849, 7
    %v851 = vsub.s32 0, %v850
    %v852 = vrot.slane %v848, %v851
    %v853 = vmul.f32 %v764, %v852
    %v854 = vlaneseq
    %v855 = vshrl.u32 %v854, 7
    %v856 = vsub.s32 3, %v855
    %v857 = vrot.slane %v598, %v856
    %v858 = vmul.f32 %v853, %v857
    %v859 = vlaneseq
    %v860 = vshrl.u32 %v859, 7
    %v861 = vsub.s32 4, %v860
    %v862 = vrot.slane %v598, %v861
    %v863 = vadd.f32 %v858, %v862
    %v864 = vld [vmem:[#allocation4] sm:$0xff]
    %v865 = vld [vmem:[#allocation4 + $0x8] sm:$0xff]
    %v866 = vld [vmem:[#allocation4 + $0x10] sm:$0x7]
    %v867 = vlaneseq
    %v868 = vshrl.u32 %v867, 7
    %v869 = vsub.s32 2, %v868
    %v870 = vrot.slane %v866, %v869
    %v872 = vsel %vm57, %v863, 0
    %v875 = vsel %vm61, %v866, 0
    %877 = vmatprep.subr.mxu0 0.0
    %878 = vmatpush1.msra.mxu0 0.0
    %879 = vmatprep.subr.mxu0 0.0
    %880 = vmatpush1.msra.mxu0 0.0
    %881 = vmatprep.subr.mxu0 0.0
    %882 = vmatpush1.msra.mxu0 0.0
    %883 = vmatprep.subr.mxu0 0.0
    %884 = vmatpush1.msra.mxu0 0.0
    %885 = vmatprep.subr.mxu0 0.0
    %886 = vmatpush1.msra.mxu0 0.0
    %887 = vmatprep.subr.mxu0 0.0
    %888 = vmatpush1.msra.mxu0 0.0
    %889 = vmatprep.subr.mxu0 0.0
    %890 = vmatpush1.msra.mxu0 0.0
    %891 = vmatprep.subr.mxu0 0.0
    %892 = vmatpush1.msra.mxu0 0.0
    %893 = vmatprep.subr.mxu0 0.0
    %894 = vmatpush1.msra.mxu0 0.0
    %895 = vmatprep.subr.mxu0 0.0
    %896 = vmatpush1.msra.mxu0 0.0
    %897 = vmatprep.subr.mxu0 0.0
    %898 = vmatpush1.msra.mxu0 0.0
    %899 = vmatprep.subr.mxu0 0.0
    %900 = vmatpush1.msra.mxu0 0.0
    %901 = vmatprep.subr.mxu0 0.0
    %902 = vmatpush1.msra.mxu0 0.0
    %903 = vmatprep.subr.mxu0 0.0
    %904 = vmatpush1.msra.mxu0 %v875
    %905 = vmatprep.subr.mxu0 0.0
    %906 = vmatpush1.msra.mxu0 %v865
    %907 = vmatprep.subr.mxu0 0.0
    %908 = vmatpush1.msra.mxu0 %v864
    %909 = vmatprep.subr.mxu0 0.0
    %910 = vmatpush2.msra.mxu0 0.0
    %911 = vmatprep.subr.mxu0 0.0
    %912 = vmatpush2.msra.mxu0 0.0
    %913 = vmatprep.subr.mxu0 0.0
    %914 = vmatpush2.msra.mxu0 0.0
    %915 = vmatprep.subr.mxu0 0.0
    %916 = vmatpush2.msra.mxu0 0.0
    %917 = vmatprep.subr.mxu0 0.0
    %918 = vmatpush2.msra.mxu0 0.0
    %919 = vmatprep.subr.mxu0 0.0
    %920 = vmatpush2.msra.mxu0 0.0
    %921 = vmatprep.subr.mxu0 0.0
    %922 = vmatpush2.msra.mxu0 0.0
    %923 = vmatprep.subr.mxu0 0.0
    %924 = vmatpush2.msra.mxu0 0.0
    %925 = vmatprep.subr.mxu0 0.0
    %926 = vmatpush2.msra.mxu0 0.0
    %927 = vmatprep.subr.mxu0 0.0
    %928 = vmatpush2.msra.mxu0 0.0
    %929 = vmatprep.subr.mxu0 0.0
    %930 = vmatpush2.msra.mxu0 0.0
    %931 = vmatprep.subr.mxu0 0.0
    %932 = vmatpush2.msra.mxu0 0.0
    %933 = vmatprep.subr.mxu0 0.0
    %934 = vmatpush2.msra.mxu0 0.0
    %935 = vmatprep.subr.mxu0 0.0
    %936 = vmatpush2.msra.mxu0 0.0
    %937 = vmatprep.subr.mxu0 0.0
    %938 = vmatpush2.msra.mxu0 0.0
    %939 = vmatprep.subr.mxu0 0.0
    %940 = vmatpush2.msra.mxu0 0.0
    %941 = vmatprep.mubr.f32.mxu0 0.0
    %942 = vmatmul.mubr.f32.gmra.mxu0 %v872
    %v943 = vpop.f32.mrf.mxu0
    %v944 = vadd.f32 %v870, %v943
    %v945 = vpop.f32.mrf.mxu0
    %946 = vdwg.mxu0
    %v947 = vmax.f32 %v944, 0.0
    %v948 = vld [vmem:[%s3] sm:$0xff]
    %v949 = vld [vmem:[%s3 + $0x8] sm:$0xff]
    %v950 = vld [vmem:[%s3 + $0x10] sm:$0xf]
    %v951 = vlaneseq
    %v952 = vshrl.u32 %v951, 7
    %v953 = vsub.s32 3, %v952
    %v954 = vrot.slane %v950, %v953
    %vm955 = vcmask 154624
    %v957 = vsel %vm955, %v947, 0
    %vm959 = vcmask 1042432
    %v961 = vsel %vm959, %v950, 0
    %963 = vmatprep.subr.mxu0 0.0
    %964 = vmatpush1.msra.mxu0 0.0
    %965 = vmatprep.subr.mxu0 0.0
    %966 = vmatpush1.msra.mxu0 0.0
    %967 = vmatprep.subr.mxu0 0.0
    %968 = vmatpush1.msra.mxu0 0.0
    %969 = vmatprep.subr.mxu0 0.0
    %970 = vmatpush1.msra.mxu0 0.0
    %971 = vmatprep.subr.mxu0 0.0
    %972 = vmatpush1.msra.mxu0 0.0
    %973 = vmatprep.subr.mxu0 0.0
    %974 = vmatpush1.msra.mxu0 0.0
    %975 = vmatprep.subr.mxu0 0.0
    %976 = vmatpush1.msra.mxu0 0.0
    %977 = vmatprep.subr.mxu0 0.0
    %978 = vmatpush1.msra.mxu0 0.0
    %979 = vmatprep.subr.mxu0 0.0
    %980 = vmatpush1.msra.mxu0 0.0
    %981 = vmatprep.subr.mxu0 0.0
    %982 = vmatpush1.msra.mxu0 0.0
    %983 = vmatprep.subr.mxu0 0.0
    %984 = vmatpush1.msra.mxu0 0.0
    %985 = vmatprep.subr.mxu0 0.0
    %986 = vmatpush1.msra.mxu0 0.0
    %987 = vmatprep.subr.mxu0 0.0
    %988 = vmatpush1.msra.mxu0 0.0
    %989 = vmatprep.subr.mxu0 0.0
    %990 = vmatpush1.msra.mxu0 %v961
    %991 = vmatprep.subr.mxu0 0.0
    %992 = vmatpush1.msra.mxu0 %v949
    %993 = vmatprep.subr.mxu0 0.0
    %994 = vmatpush1.msra.mxu0 %v948
    %995 = vmatprep.subr.mxu0 0.0
    %996 = vmatpush2.msra.mxu0 0.0
    %997 = vmatprep.subr.mxu0 0.0
    %998 = vmatpush2.msra.mxu0 0.0
    %999 = vmatprep.subr.mxu0 0.0
    %1000 = vmatpush2.msra.mxu0 0.0
    %1001 = vmatprep.subr.mxu0 0.0
    %1002 = vmatpush2.msra.mxu0 0.0
    %1003 = vmatprep.subr.mxu0 0.0
    %1004 = vmatpush2.msra.mxu0 0.0
    %1005 = vmatprep.subr.mxu0 0.0
    %1006 = vmatpush2.msra.mxu0 0.0
    %1007 = vmatprep.subr.mxu0 0.0
    %1008 = vmatpush2.msra.mxu0 0.0
    %1009 = vmatprep.subr.mxu0 0.0
    %1010 = vmatpush2.msra.mxu0 0.0
    %1011 = vmatprep.subr.mxu0 0.0
    %1012 = vmatpush2.msra.mxu0 0.0
    %1013 = vmatprep.subr.mxu0 0.0
    %1014 = vmatpush2.msra.mxu0 0.0
    %1015 = vmatprep.subr.mxu0 0.0
    %1016 = vmatpush2.msra.mxu0 0.0
    %1017 = vmatprep.subr.mxu0 0.0
    %1018 = vmatpush2.msra.mxu0 0.0
    %1019 = vmatprep.subr.mxu0 0.0
    %1020 = vmatpush2.msra.mxu0 0.0
    %1021 = vmatprep.subr.mxu0 0.0
    %1022 = vmatpush2.msra.mxu0 0.0
    %1023 = vmatprep.subr.mxu0 0.0
    %1024 = vmatpush2.msra.mxu0 0.0
    %1025 = vmatprep.subr.mxu0 0.0
    %1026 = vmatpush2.msra.mxu0 0.0
    %1027 = vmatprep.mubr.f32.mxu0 0.0
    %1028 = vmatmul.mubr.f32.gmra.mxu0 %v957
    %v1029 = vpop.f32.mrf.mxu0
    %v1030 = vadd.f32 %v954, %v1029
    %v1031 = vpop.f32.mrf.mxu0
    %1032 = vdwg.mxu0
    %vm1033 = vcmp.gt.f32.partialorder %v1030, 20.0
    %v1034 = vmul.f32 %v1030, 1.442695
    %v1035 = vpow.pop %v1034
    %v1036 = vadd.f32 %v1035, 1.0
    %v1037 = vlog2.pop %v1036
    %v1038 = vmul.f32 %v1037, 0.6931472
    %v1039 = vmul.f32 -0.5, %v1035
    %v1040 = vadd.f32 %v1039, 1.0
    %v1041 = vmul.f32 %v1040, %v1035
    %v1042 = vand.u32 2147483647, %v1035
    %vm1043 = vcmp.lt.f32.partialorder %v1042, 0.0004427343
    %v1044 = vsel %vm1043, %v1041, %v1038
    %v1045 = vsel %vm1033, %v1030, %v1044
    %v1046 = vlaneseq
    %v1047 = vand.u32 %v1046, 127
    %vm1048 = vcmp.lt.s32.totalorder %v1047, 4
    %v1049 = vsel %vm1048, %v1045, %v1030
    %1050 = vst [vmem:[%s4] sm:$0x3] %v1049
    // Predicated region
    $region26: #{_lambda_.1} parent=1 // pred_check
      _
    $region27: #{_lambda_.1} parent=1 // pred_check_branch
      %1052 = sbr.rel (0) target = $region29
    $region28: #{_lambda_.1} parent=1 // pred_region
      _
    $region29: #{_lambda_.1} parent=1 // pred_fallthru
      _
    // Predicated region
    $region30: #{_lambda_.1} parent=1 // pred_check
      _
    $region31: #{_lambda_.1} parent=1 // pred_check_branch
      %1054 = sbr.rel (0) target = $region33
    $region32: #{_lambda_.1} parent=1 // pred_region
      _
    $region33: #{_lambda_.1} parent=1 // pred_fallthru
      _
    %1055 = vsyncpa [#allocation3], 1
    %1056 = vsyncpa [#allocation5], 1

</llo_original>
